<compile_context>
chip_gen: v7x
topology: tpu7x:2x2x1
jax: 0.10.0
libtpu: 0.0.40
codegen_flags: <defaults>
</compile_context>

<pallas_src>
import functools

import jax
import jax.numpy as jnp
from jax.experimental import pallas as pl
from jax.experimental.pallas import tpu as pltpu


def _round_up(x, m):
    return (x + m - 1) // m * m


def _policy_kernel(x_ref, w1_ref, b1_ref, w2_ref, b2_ref, w3_ref, b3_ref,
                   mean_ref):
    # Layer 1: Linear(S, Hp) + Tanh   (bias/tanh in f32, MXU acc in f32)
    x = x_ref[...]                                                   # [TB, S]
    h1 = jnp.dot(x, w1_ref[...], preferred_element_type=jnp.float32)
    h1 = jnp.tanh(h1 + b1_ref[...])                                  # [TB, Hp] f32

    # Layer 2: Linear(Hp, Hp) + Tanh
    h2 = jnp.dot(h1.astype(w2_ref.dtype), w2_ref[...],
                 preferred_element_type=jnp.float32)
    h2 = jnp.tanh(h2 + b2_ref[...])                                  # [TB, Hp] f32

    # Layer 3: Linear(Hp, A)  (mean head)
    mean = jnp.dot(h2.astype(w3_ref.dtype), w3_ref[...],
                   preferred_element_type=jnp.float32)
    mean = mean + b3_ref[...]                                        # [TB, A]
    mean_ref[...] = mean.astype(mean_ref.dtype)


def rl_policy_forward(x, params, *, batch_tile=1024, use_bf16_matmul=False):
    """Returns (mean [B, A], std [A]) of the Gaussian policy.

    Note: at tiny batch sizes (single env steps) a fused XLA forward is at
    least as fast; the kernel pays off for large batched rollouts (B >= 512).
    """
    w1, b1, w2, b2, w3, b3, log_std = params
    B, S = x.shape
    H = w1.shape[1]
    A = w3.shape[1]

    # std does not depend on x -- compute outside the kernel so it is not
    # re-stored on every grid step.
    std = jnp.exp(log_std)

    # Zero-pad the hidden width to a lane-dense multiple of 128.  Since the
    # padded bias entries are 0 and tanh(0) = 0, padded activations stay
    # exactly zero and the result is bit-identical to the unpadded math.
    Hp = _round_up(H, 128)
    w1p = jnp.zeros((S, Hp), w1.dtype).at[:, :H].set(w1)
    b1p = jnp.zeros((1, Hp), b1.dtype).at[0, :H].set(b1)
    w2p = jnp.zeros((Hp, Hp), w2.dtype).at[:H, :H].set(w2)
    b2p = jnp.zeros((1, Hp), b2.dtype).at[0, :H].set(b2)
    w3p = jnp.zeros((Hp, A), w3.dtype).at[:H, :].set(w3)
    b3p = b3.reshape(1, A)

    x_in = x
    if use_bf16_matmul:
        # bf16 MXU operands, f32 accumulation (preferred_element_type above).
        x_in = x_in.astype(jnp.bfloat16)
        w1p = w1p.astype(jnp.bfloat16)
        w2p = w2p.astype(jnp.bfloat16)
        w3p = w3p.astype(jnp.bfloat16)

    # Batch tiling: TB rows per grid step.  TB is a multiple of 16 (covers f32
    # and bf16 sublane packing); B is padded up to a multiple of TB.
    TB = min(batch_tile, _round_up(max(B, 1), 16))
    Bp = _round_up(B, TB)
    if Bp != B:
        x_in = jnp.zeros((Bp, S), x_in.dtype).at[:B].set(x_in)

    resident = lambda shape: pl.BlockSpec(shape, lambda i: (0, 0))

    mean = pl.pallas_call(
        _policy_kernel,
        out_shape=jax.ShapeDtypeStruct((Bp, A), jnp.float32),
        grid=(Bp // TB,),
        in_specs=[
            pl.BlockSpec((TB, S), lambda i: (i, 0)),   # x: tiled over batch
            resident((S, Hp)), resident((1, Hp)),      # layer-1 weights (VMEM-resident)
            resident((Hp, Hp)), resident((1, Hp)),     # layer-2 weights
            resident((Hp, A)), resident((1, A)),       # layer-3 weights
        ],
        out_specs=pl.BlockSpec((TB, A), lambda i: (i, 0)),
        compiler_params=pltpu.CompilerParams(
            dimension_semantics=("parallel",)),        # megacore on v7x
    )(x_in, w1p, b1p, w2p, b2p, w3p, b3p)

    return mean[:B], std


def init_params(key, state_dim, action_dim, hidden_dim=64):
    """Deterministic init mirroring the PyTorch module's shapes.

    Weights are stored as [in, out] (transposed w.r.t. torch's [out, in]).
    Last layer: weight * 0.1, bias * 0.0, log_std = zeros(action_dim).
    """
    ks = jax.random.split(key, 6)

    def uniform_fan_in(k, fan_in, shape):
        bound = 1.0 / jnp.sqrt(float(fan_in))
        return jax.random.uniform(k, shape, jnp.float32, -bound, bound)

    w1 = uniform_fan_in(ks[0], state_dim, (state_dim, hidden_dim))
    b1 = uniform_fan_in(ks[1], state_dim, (hidden_dim,))
    w2 = uniform_fan_in(ks[2], hidden_dim, (hidden_dim, hidden_dim))
    b2 = uniform_fan_in(ks[3], hidden_dim, (hidden_dim,))
    w3 = uniform_fan_in(ks[4], hidden_dim, (hidden_dim, action_dim)) * 0.1
    b3 = uniform_fan_in(ks[5], hidden_dim, (action_dim,)) * 0.0
    log_std = jnp.zeros((action_dim,), jnp.float32)
    return (w1, b1, w2, b2, w3, b3, log_std)


def _reference_forward(x, params):
    w1, b1, w2, b2, w3, b3, log_std = params
    h = jnp.tanh(x @ w1 + b1)
    h = jnp.tanh(h @ w2 + b2)
    mean = h @ w3 + b3
    return mean, jnp.exp(log_std)


if __name__ == "__main__":
    STATE_DIM, ACTION_DIM, HIDDEN_DIM, BATCH = 8, 4, 64, 2

    key = jax.random.PRNGKey(0)
    k_params, k_x = jax.random.split(key)
    params = init_params(k_params, STATE_DIM, ACTION_DIM, HIDDEN_DIM)
    x = jax.random.normal(k_x, (BATCH, STATE_DIM), jnp.float32)

    mean, std = rl_policy_forward(x, params)
    jax.block_until_ready((mean, std))

    mean_ref, std_ref = _reference_forward(x, params)
    assert mean.shape == (BATCH, ACTION_DIM)
    assert std.shape == (ACTION_DIM,)
    assert jnp.allclose(mean, mean_ref, atol=1e-5, rtol=1e-5)
    assert jnp.allclose(std, std_ref, atol=1e-6, rtol=1e-6)

    # TODO(synk): torch.distributions.Independent(Normal(...)) has no Pallas
    # equivalent; the kernel returns the distribution parameters (mean, std).
    print("KERNEL_OK")
</pallas_src>

<mosaic_0001>
module attributes {stable_mosaic.version = 11 : i64} {
  func.func @_policy_kernel(%arg0: i32, %arg1: memref<16x8xf32, #tpu.memory_space<vmem>>, %arg2: memref<8x128xf32, #tpu.memory_space<vmem>>, %arg3: memref<1x128xf32, #tpu.memory_space<vmem>>, %arg4: memref<128x128xf32, #tpu.memory_space<vmem>>, %arg5: memref<1x128xf32, #tpu.memory_space<vmem>>, %arg6: memref<128x4xf32, #tpu.memory_space<vmem>>, %arg7: memref<1x4xf32, #tpu.memory_space<vmem>>, %arg8: memref<16x4xf32, #tpu.memory_space<vmem>>) attributes {dimension_semantics = [#tpu.dimension_semantics<parallel>], iteration_bounds = array<i64: 1>, scalar_prefetch = 0 : i64, scratch_operands = 0 : i64, tpu.core_type = #tpu.core_type<tc>, window_params = [{transform_indices = @transform_0, window_bounds = array<i64: 16, 8>}, {pipeline_mode = #tpu.pipeline_mode<synchronous>, transform_indices = @transform_1, window_bounds = array<i64: 8, 128>}, {pipeline_mode = #tpu.pipeline_mode<synchronous>, transform_indices = @transform_2, window_bounds = array<i64: 1, 128>}, {pipeline_mode = #tpu.pipeline_mode<synchronous>, transform_indices = @transform_3, window_bounds = array<i64: 128, 128>}, {pipeline_mode = #tpu.pipeline_mode<synchronous>, transform_indices = @transform_4, window_bounds = array<i64: 1, 128>}, {pipeline_mode = #tpu.pipeline_mode<synchronous>, transform_indices = @transform_5, window_bounds = array<i64: 128, 4>}, {pipeline_mode = #tpu.pipeline_mode<synchronous>, transform_indices = @transform_6, window_bounds = array<i64: 1, 4>}, {transform_indices = @transform_7, window_bounds = array<i64: 16, 4>}]} {
    %c0 = arith.constant 0 : index
    %c0_0 = arith.constant 0 : index
    %0 = vector.load %arg1[%c0, %c0_0] : memref<16x8xf32, #tpu.memory_space<vmem>>, vector<16x8xf32>
    %c0_1 = arith.constant 0 : index
    %c0_2 = arith.constant 0 : index
    %1 = vector.load %arg2[%c0_1, %c0_2] : memref<8x128xf32, #tpu.memory_space<vmem>>, vector<8x128xf32>
    %cst = arith.constant dense<0.000000e+00> : vector<16x128xf32>
    %2 = tpu.matmul %0, %1, %cst {dimension_numbers = #tpu.dot_dimension_numbers<[1], [0], [0], [1], [0, 0, 1, 1], [], []>} : vector<16x8xf32>, vector<8x128xf32>, vector<16x128xf32> -> vector<16x128xf32>
    %c0_3 = arith.constant 0 : index
    %c0_4 = arith.constant 0 : index
    %3 = vector.load %arg3[%c0_3, %c0_4] : memref<1x128xf32, #tpu.memory_space<vmem>>, vector<1x128xf32>
    %4 = vector.broadcast %3 : vector<1x128xf32> to vector<16x128xf32>
    %5 = arith.addf %2, %4 : vector<16x128xf32>
    %6 = math.tanh %5 : vector<16x128xf32>
    %c0_5 = arith.constant 0 : index
    %c0_6 = arith.constant 0 : index
    %7 = vector.load %arg4[%c0_5, %c0_6] : memref<128x128xf32, #tpu.memory_space<vmem>>, vector<128x128xf32>
    %cst_7 = arith.constant dense<0.000000e+00> : vector<16x128xf32>
    %8 = tpu.matmul %6, %7, %cst_7 {dimension_numbers = #tpu.dot_dimension_numbers<[1], [0], [0], [1], [0, 0, 1, 1], [], []>} : vector<16x128xf32>, vector<128x128xf32>, vector<16x128xf32> -> vector<16x128xf32>
    %c0_8 = arith.constant 0 : index
    %c0_9 = arith.constant 0 : index
    %9 = vector.load %arg5[%c0_8, %c0_9] : memref<1x128xf32, #tpu.memory_space<vmem>>, vector<1x128xf32>
    %10 = vector.broadcast %9 : vector<1x128xf32> to vector<16x128xf32>
    %11 = arith.addf %8, %10 : vector<16x128xf32>
    %12 = math.tanh %11 : vector<16x128xf32>
    %c0_10 = arith.constant 0 : index
    %c0_11 = arith.constant 0 : index
    %13 = vector.load %arg6[%c0_10, %c0_11] : memref<128x4xf32, #tpu.memory_space<vmem>>, vector<128x4xf32>
    %cst_12 = arith.constant dense<0.000000e+00> : vector<16x4xf32>
    %14 = tpu.matmul %12, %13, %cst_12 {dimension_numbers = #tpu.dot_dimension_numbers<[1], [0], [0], [1], [0, 0, 1, 1], [], []>} : vector<16x128xf32>, vector<128x4xf32>, vector<16x4xf32> -> vector<16x4xf32>
    %c0_13 = arith.constant 0 : index
    %c0_14 = arith.constant 0 : index
    %15 = vector.load %arg7[%c0_13, %c0_14] : memref<1x4xf32, #tpu.memory_space<vmem>>, vector<1x4xf32>
    %16 = vector.broadcast %15 : vector<1x4xf32> to vector<16x4xf32>
    %17 = arith.addf %14, %16 : vector<16x4xf32>
    %c0_15 = arith.constant 0 : index
    %c0_16 = arith.constant 0 : index
    %18 = vector.load %arg8[%c0_15, %c0_16] : memref<16x4xf32, #tpu.memory_space<vmem>>, vector<16x4xf32>
    tpu.vector_store %arg8[%c0_15, %c0_16], %17 {strides = array<i32>} : memref<16x4xf32, #tpu.memory_space<vmem>>, vector<16x4xf32>,
    return
  }
  func.func @transform_0(%arg0: i32) -> (i32, i32) {
    %c0_i32 = arith.constant 0 : i32
    %c0_i32_0 = arith.constant 0 : i32
    return %arg0, %c0_i32 : i32, i32
  }
  func.func @transform_1(%arg0: i32) -> (i32, i32) {
    %c0_i32 = arith.constant 0 : i32
    %c0_i32_0 = arith.constant 0 : i32
    %c0_i32_1 = arith.constant 0 : i32
    return %c0_i32, %c0_i32_0 : i32, i32
  }
  func.func @transform_2(%arg0: i32) -> (i32, i32) {
    %c0_i32 = arith.constant 0 : i32
    %c0_i32_0 = arith.constant 0 : i32
    %c0_i32_1 = arith.constant 0 : i32
    return %c0_i32, %c0_i32_0 : i32, i32
  }
  func.func @transform_3(%arg0: i32) -> (i32, i32) {
    %c0_i32 = arith.constant 0 : i32
    %c0_i32_0 = arith.constant 0 : i32
    %c0_i32_1 = arith.constant 0 : i32
    return %c0_i32, %c0_i32_0 : i32, i32
  }
  func.func @transform_4(%arg0: i32) -> (i32, i32) {
    %c0_i32 = arith.constant 0 : i32
    %c0_i32_0 = arith.constant 0 : i32
    %c0_i32_1 = arith.constant 0 : i32
    return %c0_i32, %c0_i32_0 : i32, i32
  }
  func.func @transform_5(%arg0: i32) -> (i32, i32) {
    %c0_i32 = arith.constant 0 : i32
    %c0_i32_0 = arith.constant 0 : i32
    %c0_i32_1 = arith.constant 0 : i32
    return %c0_i32, %c0_i32_0 : i32, i32
  }
  func.func @transform_6(%arg0: i32) -> (i32, i32) {
    %c0_i32 = arith.constant 0 : i32
    %c0_i32_0 = arith.constant 0 : i32
    %c0_i32_1 = arith.constant 0 : i32
    return %c0_i32, %c0_i32_0 : i32, i32
  }
  func.func @transform_7(%arg0: i32) -> (i32, i32) {
    %c0_i32 = arith.constant 0 : i32
    %c0_i32_0 = arith.constant 0 : i32
    return %arg0, %c0_i32 : i32, i32
  }
}

</mosaic_0001>

<llo_original>
// kernel: tpu_custom_call.1
$region0: #{tpu_custom_call.1}
  #allocation0 [shape = 'u32[]', space=smem, size = 0x4, offset = 0x4, fixed_abs, tag = 'smem constant byte address 0x4 - core index']
  #allocation1 [shape = 'u32[144,128]{1,0:T(1,128)}', space=vmem, size = 0x12000, scoped, tag = 'internal scratch']
  %s0 = inlined_call_operand.vmem [shape: f32[16,8], index: 0, kind: input, shape index: {}]
  %s1 = inlined_call_operand.vmem [shape: f32[8,128], index: 1, kind: input, shape index: {}]
  %s2 = inlined_call_operand.vmem [shape: f32[1,128], index: 2, kind: input, shape index: {}]
  %s3 = inlined_call_operand.vmem [shape: f32[128,128], index: 3, kind: input, shape index: {}]
  %s4 = inlined_call_operand.vmem [shape: f32[1,128], index: 4, kind: input, shape index: {}]
  %s5 = inlined_call_operand.vmem [shape: f32[128,4], index: 5, kind: input, shape index: {}]
  %s6 = inlined_call_operand.vmem [shape: f32[1,4], index: 6, kind: input, shape index: {}]
  %s7 = inlined_call_operand.vmem [shape: f32[16,4], index: 7, kind: output, shape index: {}]
  %s8 = sld [smem:[#allocation0]]
  $region38: #{tpu_custom_call.1} parent=0
    _
  %s10 = ssub.s32 1, %s8
  %s11 = scalar_select 0, %s10, %s8
  // Predicated region
  $region2: #{tpu_custom_call.1} parent=0 // pred_check
    _
  $region3: #{tpu_custom_call.1} parent=0 // pred_check_branch
    %13 = sbr.rel (0) target = $region5
  $region4: #{tpu_custom_call.1} parent=0 // pred_region
    _
  $region5: #{tpu_custom_call.1} parent=0 // pred_fallthru
    _
  // Predicated region
  $region6: #{tpu_custom_call.1} parent=0 // pred_check
    _
  $region7: #{tpu_custom_call.1} parent=0 // pred_check_branch
    %15 = sbr.rel (0) target = $region9
  $region8: #{tpu_custom_call.1} parent=0 // pred_region
    _
  $region9: #{tpu_custom_call.1} parent=0 // pred_fallthru
    _
  // Predicated region
  $region10: #{tpu_custom_call.1} parent=0 // pred_check
    _
  $region11: #{tpu_custom_call.1} parent=0 // pred_check_branch
    %17 = sbr.rel (0) target = $region13
  $region12: #{tpu_custom_call.1} parent=0 // pred_region
    _
  $region13: #{tpu_custom_call.1} parent=0 // pred_fallthru
    _
  // Predicated region
  $region14: #{tpu_custom_call.1} parent=0 // pred_check
    _
  $region15: #{tpu_custom_call.1} parent=0 // pred_check_branch
    %19 = sbr.rel (0) target = $region17
  $region16: #{tpu_custom_call.1} parent=0 // pred_region
    _
  $region17: #{tpu_custom_call.1} parent=0 // pred_fallthru
    _
  // Predicated region
  $region18: #{tpu_custom_call.1} parent=0 // pred_check
    _
  $region19: #{tpu_custom_call.1} parent=0 // pred_check_branch
    %21 = sbr.rel (0) target = $region21
  $region20: #{tpu_custom_call.1} parent=0 // pred_region
    _
  $region21: #{tpu_custom_call.1} parent=0 // pred_fallthru
    _
  // Predicated region
  $region22: #{tpu_custom_call.1} parent=0 // pred_check
    _
  $region23: #{tpu_custom_call.1} parent=0 // pred_check_branch
    %23 = sbr.rel (0) target = $region25
  $region24: #{tpu_custom_call.1} parent=0 // pred_region
    _
  $region25: #{tpu_custom_call.1} parent=0 // pred_fallthru
    _
  // Predicated region
  $region26: #{tpu_custom_call.1} parent=0 // pred_check
    _
  $region27: #{tpu_custom_call.1} parent=0 // pred_check_branch
    %25 = sbr.rel (0) target = $region29
  $region28: #{tpu_custom_call.1} parent=0 // pred_region
    _
  $region29: #{tpu_custom_call.1} parent=0 // pred_fallthru
    _
  %v26 = vld [vmem:[%s0] sm:$0xff]
  %v27 = vld [vmem:[%s0 + $0x8] sm:$0xff]
  %v28 = vld [vmem:[%s1] sm:$0xff]
  %v29 = vld [vmem:[%s2] sm:$0x1]
  %v31 = vlaneseq
  %v32 = vshrl.u32 %v31, 7
  %v33 = vsub.s32 0, %v32
  %v34 = vrot.slane %v29, %v33
  %vm36 = vcmask 64512
  %v38 = vsel %vm36, %v26, 0
  %v41 = vsel %vm36, %v27, 0
  %43 = vmatprep.subr.mxu0 0.0
  %44 = vmatpush1.msra.mxu0 %v28
  %45 = vmatprep.subr.mxu0 0.0
  %46 = vmatpush1.msra.mxu0 0.0
  %47 = vmatprep.subr.mxu0 0.0
  %48 = vmatpush1.msra.mxu0 0.0
  %49 = vmatprep.subr.mxu0 0.0
  %50 = vmatpush1.msra.mxu0 0.0
  %51 = vmatprep.subr.mxu0 0.0
  %52 = vmatpush1.msra.mxu0 0.0
  %53 = vmatprep.subr.mxu0 0.0
  %54 = vmatpush1.msra.mxu0 0.0
  %55 = vmatprep.subr.mxu0 0.0
  %56 = vmatpush1.msra.mxu0 0.0
  %57 = vmatprep.subr.mxu0 0.0
  %58 = vmatpush1.msra.mxu0 0.0
  %59 = vmatprep.subr.mxu0 0.0
  %60 = vmatpush1.msra.mxu0 0.0
  %61 = vmatprep.subr.mxu0 0.0
  %62 = vmatpush1.msra.mxu0 0.0
  %63 = vmatprep.subr.mxu0 0.0
  %64 = vmatpush1.msra.mxu0 0.0
  %65 = vmatprep.subr.mxu0 0.0
  %66 = vmatpush1.msra.mxu0 0.0
  %67 = vmatprep.subr.mxu0 0.0
  %68 = vmatpush1.msra.mxu0 0.0
  %69 = vmatprep.subr.mxu0 0.0
  %70 = vmatpush1.msra.mxu0 0.0
  %71 = vmatprep.subr.mxu0 0.0
  %72 = vmatpush1.msra.mxu0 0.0
  %73 = vmatprep.subr.mxu0 0.0
  %74 = vmatpush1.msra.mxu0 0.0
  %75 = vmatprep.subr.mxu0 0.0
  %76 = vmatpush1.msra.mxu0 0.0
  %77 = vmatprep.subr.mxu0 0.0
  %78 = vmatpush1.msra.mxu0 0.0
  %79 = vmatprep.subr.mxu0 0.0
  %80 = vmatpush1.msra.mxu0 0.0
  %81 = vmatprep.subr.mxu0 0.0
  %82 = vmatpush1.msra.mxu0 0.0
  %83 = vmatprep.subr.mxu0 0.0
  %84 = vmatpush1.msra.mxu0 0.0
  %85 = vmatprep.subr.mxu0 0.0
  %86 = vmatpush1.msra.mxu0 0.0
  %87 = vmatprep.subr.mxu0 0.0
  %88 = vmatpush1.msra.mxu0 0.0
  %89 = vmatprep.subr.mxu0 0.0
  %90 = vmatpush1.msra.mxu0 0.0
  %91 = vmatprep.subr.mxu0 0.0
  %92 = vmatpush1.msra.mxu0 0.0
  %93 = vmatprep.subr.mxu0 0.0
  %94 = vmatpush1.msra.mxu0 0.0
  %95 = vmatprep.subr.mxu0 0.0
  %96 = vmatpush1.msra.mxu0 0.0
  %97 = vmatprep.subr.mxu0 0.0
  %98 = vmatpush1.msra.mxu0 0.0
  %99 = vmatprep.subr.mxu0 0.0
  %100 = vmatpush1.msra.mxu0 0.0
  %101 = vmatprep.subr.mxu0 0.0
  %102 = vmatpush1.msra.mxu0 0.0
  %103 = vmatprep.subr.mxu0 0.0
  %104 = vmatpush1.msra.mxu0 0.0
  %105 = vmatprep.subr.mxu0 0.0
  %106 = vmatpush1.msra.mxu0 0.0
  %107 = vmatprep.mubr.f32.mxu0 0.0
  %108 = vmatmul.mubr.f32.gmra.mrb[0].mxu0 %v38
  %v109 = vpop.f32.mrb[0].mxu0
  %v110 = vadd.f32 %v34, %v109
  %v111 = vpop.f32.mrb[0].mxu0
  %112 = vmatprep.mubr.f32.mxu0 0.0
  %113 = vmatmul.mubr.f32.gmra.mrb[0].mxu0 %v41
  %v114 = vpop.f32.mrb[0].mxu0
  %v115 = vadd.f32 %v34, %v114
  %v116 = vpop.f32.mrb[0].mxu0
  %117 = vdwg.mxu0
  %v118 = vtanh.pop %v110
  %v119 = vtanh.pop %v115
  %v120 = vld [vmem:[%s3] sm:$0xff]
  %v121 = vld [vmem:[%s3 + $0x8] sm:$0xff]
  %v122 = vld [vmem:[%s3 + $0x10] sm:$0xff]
  %v123 = vld [vmem:[%s3 + $0x18] sm:$0xff]
  %v124 = vld [vmem:[%s3 + $0x20] sm:$0xff]
  %v125 = vld [vmem:[%s3 + $0x28] sm:$0xff]
  %v126 = vld [vmem:[%s3 + $0x30] sm:$0xff]
  %v127 = vld [vmem:[%s3 + $0x38] sm:$0xff]
  %v128 = vld [vmem:[%s3 + $0x40] sm:$0xff]
  %v129 = vld [vmem:[%s3 + $0x48] sm:$0xff]
  %v130 = vld [vmem:[%s3 + $0x50] sm:$0xff]
  %v131 = vld [vmem:[%s3 + $0x58] sm:$0xff]
  %v132 = vld [vmem:[%s3 + $0x60] sm:$0xff]
  %v133 = vld [vmem:[%s3 + $0x68] sm:$0xff]
  %v134 = vld [vmem:[%s3 + $0x70] sm:$0xff]
  %v135 = vld [vmem:[%s3 + $0x78] sm:$0xff]
  %v136 = vld [vmem:[%s4] sm:$0x1]
  %v138 = vlaneseq
  %v139 = vshrl.u32 %v138, 7
  %v140 = vsub.s32 0, %v139
  %v141 = vrot.slane %v136, %v140
  %143 = vmatprep.subr.mxu0 0.0
  %144 = vmatpush1.msra.mxu0 %v120
  %145 = vmatprep.subr.mxu0 0.0
  %146 = vmatpush1.msra.mxu0 %v121
  %147 = vmatprep.subr.mxu0 0.0
  %148 = vmatpush1.msra.mxu0 %v122
  %149 = vmatprep.subr.mxu0 0.0
  %150 = vmatpush1.msra.mxu0 %v123
  %151 = vmatprep.subr.mxu0 0.0
  %152 = vmatpush1.msra.mxu0 %v124
  %153 = vmatprep.subr.mxu0 0.0
  %154 = vmatpush1.msra.mxu0 %v125
  %155 = vmatprep.subr.mxu0 0.0
  %156 = vmatpush1.msra.mxu0 %v126
  %157 = vmatprep.subr.mxu0 0.0
  %158 = vmatpush1.msra.mxu0 %v127
  %159 = vmatprep.subr.mxu0 0.0
  %160 = vmatpush1.msra.mxu0 %v128
  %161 = vmatprep.subr.mxu0 0.0
  %162 = vmatpush1.msra.mxu0 %v129
  %163 = vmatprep.subr.mxu0 0.0
  %164 = vmatpush1.msra.mxu0 %v130
  %165 = vmatprep.subr.mxu0 0.0
  %166 = vmatpush1.msra.mxu0 %v131
  %167 = vmatprep.subr.mxu0 0.0
  %168 = vmatpush1.msra.mxu0 %v132
  %169 = vmatprep.subr.mxu0 0.0
  %170 = vmatpush1.msra.mxu0 %v133
  %171 = vmatprep.subr.mxu0 0.0
  %172 = vmatpush1.msra.mxu0 %v134
  %173 = vmatprep.subr.mxu0 0.0
  %174 = vmatpush1.msra.mxu0 %v135
  %175 = vmatprep.subr.mxu0 0.0
  %176 = vmatpush1.msra.mxu0 0.0
  %177 = vmatprep.subr.mxu0 0.0
  %178 = vmatpush1.msra.mxu0 0.0
  %179 = vmatprep.subr.mxu0 0.0
  %180 = vmatpush1.msra.mxu0 0.0
  %181 = vmatprep.subr.mxu0 0.0
  %182 = vmatpush1.msra.mxu0 0.0
  %183 = vmatprep.subr.mxu0 0.0
  %184 = vmatpush1.msra.mxu0 0.0
  %185 = vmatprep.subr.mxu0 0.0
  %186 = vmatpush1.msra.mxu0 0.0
  %187 = vmatprep.subr.mxu0 0.0
  %188 = vmatpush1.msra.mxu0 0.0
  %189 = vmatprep.subr.mxu0 0.0
  %190 = vmatpush1.msra.mxu0 0.0
  %191 = vmatprep.subr.mxu0 0.0
  %192 = vmatpush1.msra.mxu0 0.0
  %193 = vmatprep.subr.mxu0 0.0
  %194 = vmatpush1.msra.mxu0 0.0
  %195 = vmatprep.subr.mxu0 0.0
  %196 = vmatpush1.msra.mxu0 0.0
  %197 = vmatprep.subr.mxu0 0.0
  %198 = vmatpush1.msra.mxu0 0.0
  %199 = vmatprep.subr.mxu0 0.0
  %200 = vmatpush1.msra.mxu0 0.0
  %201 = vmatprep.subr.mxu0 0.0
  %202 = vmatpush1.msra.mxu0 0.0
  %203 = vmatprep.subr.mxu0 0.0
  %204 = vmatpush1.msra.mxu0 0.0
  %205 = vmatprep.subr.mxu0 0.0
  %206 = vmatpush1.msra.mxu0 0.0
  %207 = vmatprep.mubr.f32.mxu0 0.0
  %208 = vmatmul.mubr.f32.gmra.mrb[0].mxu0 %v118
  %v209 = vpop.f32.mrb[0].mxu0
  %v210 = vadd.f32 %v141, %v209
  %v211 = vpop.f32.mrb[0].mxu0
  %212 = vmatprep.mubr.f32.mxu0 0.0
  %213 = vmatmul.mubr.f32.gmra.mrb[0].mxu0 %v119
  %v214 = vpop.f32.mrb[0].mxu0
  %v215 = vadd.f32 %v141, %v214
  %v216 = vpop.f32.mrb[0].mxu0
  %217 = vdwg.mxu0
  %v218 = vtanh.pop %v210
  %v219 = vtanh.pop %v215
  %v220 = vld [vmem:[%s5] sm:$0xff]
  %v221 = vld [vmem:[%s5 + $0x8] sm:$0xff]
  %v222 = vld [vmem:[%s5 + $0x10] sm:$0xff]
  %v223 = vld [vmem:[%s5 + $0x18] sm:$0xff]
  %v224 = vld [vmem:[%s5 + $0x20] sm:$0xff]
  %v225 = vld [vmem:[%s5 + $0x28] sm:$0xff]
  %v226 = vld [vmem:[%s5 + $0x30] sm:$0xff]
  %v227 = vld [vmem:[%s5 + $0x38] sm:$0xff]
  %v228 = vld [vmem:[%s5 + $0x40] sm:$0xff]
  %v229 = vld [vmem:[%s5 + $0x48] sm:$0xff]
  %v230 = vld [vmem:[%s5 + $0x50] sm:$0xff]
  %v231 = vld [vmem:[%s5 + $0x58] sm:$0xff]
  %v232 = vld [vmem:[%s5 + $0x60] sm:$0xff]
  %v233 = vld [vmem:[%s5 + $0x68] sm:$0xff]
  %v234 = vld [vmem:[%s5 + $0x70] sm:$0xff]
  %v235 = vld [vmem:[%s5 + $0x78] sm:$0xff]
  %v236 = vld [vmem:[%s6] sm:$0x1]
  %v238 = vlaneseq
  %v239 = vshrl.u32 %v238, 7
  %v240 = vsub.s32 0, %v239
  %v241 = vrot.slane %v236, %v240
  %243 = vmatprep.subr.mxu0 0.0
  %244 = vmatpush1.msra.mxu0 %v220
  %245 = vmatprep.subr.mxu0 0.0
  %246 = vmatpush1.msra.mxu0 %v221
  %247 = vmatprep.subr.mxu0 0.0
  %248 = vmatpush1.msra.mxu0 %v222
  %249 = vmatprep.subr.mxu0 0.0
  %250 = vmatpush1.msra.mxu0 %v223
  %251 = vmatprep.subr.mxu0 0.0
  %252 = vmatpush1.msra.mxu0 %v224
  %253 = vmatprep.subr.mxu0 0.0
  %254 = vmatpush1.msra.mxu0 %v225
  %255 = vmatprep.subr.mxu0 0.0
  %256 = vmatpush1.msra.mxu0 %v226
  %257 = vmatprep.subr.mxu0 0.0
  %258 = vmatpush1.msra.mxu0 %v227
  %259 = vmatprep.subr.mxu0 0.0
  %260 = vmatpush1.msra.mxu0 %v228
  %261 = vmatprep.subr.mxu0 0.0
  %262 = vmatpush1.msra.mxu0 %v229
  %263 = vmatprep.subr.mxu0 0.0
  %264 = vmatpush1.msra.mxu0 %v230
  %265 = vmatprep.subr.mxu0 0.0
  %266 = vmatpush1.msra.mxu0 %v231
  %267 = vmatprep.subr.mxu0 0.0
  %268 = vmatpush1.msra.mxu0 %v232
  %269 = vmatprep.subr.mxu0 0.0
  %270 = vmatpush1.msra.mxu0 %v233
  %271 = vmatprep.subr.mxu0 0.0
  %272 = vmatpush1.msra.mxu0 %v234
  %273 = vmatprep.subr.mxu0 0.0
  %274 = vmatpush1.msra.mxu0 %v235
  %275 = vmatprep.subr.mxu0 0.0
  %276 = vmatpush1.msra.mxu0 0.0
  %277 = vmatprep.subr.mxu0 0.0
  %278 = vmatpush1.msra.mxu0 0.0
  %279 = vmatprep.subr.mxu0 0.0
  %280 = vmatpush1.msra.mxu0 0.0
  %281 = vmatprep.subr.mxu0 0.0
  %282 = vmatpush1.msra.mxu0 0.0
  %283 = vmatprep.subr.mxu0 0.0
  %284 = vmatpush1.msra.mxu0 0.0
  %285 = vmatprep.subr.mxu0 0.0
  %286 = vmatpush1.msra.mxu0 0.0
  %287 = vmatprep.subr.mxu0 0.0
  %288 = vmatpush1.msra.mxu0 0.0
  %289 = vmatprep.subr.mxu0 0.0
  %290 = vmatpush1.msra.mxu0 0.0
  %291 = vmatprep.subr.mxu0 0.0
  %292 = vmatpush1.msra.mxu0 0.0
  %293 = vmatprep.subr.mxu0 0.0
  %294 = vmatpush1.msra.mxu0 0.0
  %295 = vmatprep.subr.mxu0 0.0
  %296 = vmatpush1.msra.mxu0 0.0
  %297 = vmatprep.subr.mxu0 0.0
  %298 = vmatpush1.msra.mxu0 0.0
  %299 = vmatprep.subr.mxu0 0.0
  %300 = vmatpush1.msra.mxu0 0.0
  %301 = vmatprep.subr.mxu0 0.0
  %302 = vmatpush1.msra.mxu0 0.0
  %303 = vmatprep.subr.mxu0 0.0
  %304 = vmatpush1.msra.mxu0 0.0
  %305 = vmatprep.subr.mxu0 0.0
  %306 = vmatpush1.msra.mxu0 0.0
  %307 = vmatprep.mubr.f32.mxu0 0.0
  %308 = vmatmul.mubr.f32.gmra.mrb[0].mxu0 %v218
  %v309 = vpop.f32.mrb[0].mxu0
  %v310 = vadd.f32 %v241, %v309
  %v311 = vpop.f32.mrb[0].mxu0
  %312 = vmatprep.mubr.f32.mxu0 0.0
  %313 = vmatmul.mubr.f32.gmra.mrb[0].mxu0 %v219
  %v314 = vpop.f32.mrb[0].mxu0
  %v315 = vadd.f32 %v241, %v314
  %v316 = vpop.f32.mrb[0].mxu0
  %317 = vdwg.mxu0
  %vm318 = vcmask 31744
  %319 = vst.msk [vmem:[%s7] sm:$0xff] %vm318, %v310
  %320 = vst.msk [vmem:[%s7 + $0x8] sm:$0xff] %vm318, %v315
  // Predicated region
  $region30: #{tpu_custom_call.1} parent=0 // pred_check
    _
  $region31: #{tpu_custom_call.1} parent=0 // pred_check_branch
    %322 = sbr.rel (0) target = $region33
  $region32: #{tpu_custom_call.1} parent=0 // pred_region
    _
  $region33: #{tpu_custom_call.1} parent=0 // pred_fallthru
    _
  // Predicated region
  $region34: #{tpu_custom_call.1} parent=0 // pred_check
    _
  $region35: #{tpu_custom_call.1} parent=0 // pred_check_branch
    %324 = sbr.rel (0) target = $region37
  $region36: #{tpu_custom_call.1} parent=0 // pred_region
    _
  $region37: #{tpu_custom_call.1} parent=0 // pred_fallthru
    _

</llo_original>
